<compile_context>
chip_gen: v6e
topology: v6e:2x2x1
jax: 0.10.0
libtpu: 0.0.40
codegen_flags: <defaults>
</compile_context>

<pallas_src>
import numpy as np
import jax
import jax.numpy as jnp
from jax.experimental import pallas as pl
from jax.experimental.pallas import tpu as pltpu


# --------------------------- VMEM budget (per generation) ----------------------

def _default_vmem_limit():
    cap = None
    try:
        info = pltpu.get_tpu_info()
        cap = getattr(info, "vmem_capacity_bytes", None)
    except Exception:
        cap = None
    if not cap:
        cap = 64 * 1024 * 1024          # conservative: v7x per-core VMEM
    # Leave headroom for Mosaic internals; cap well below 128 MiB parts.
    return int(min(max(int(cap) - 16 * 1024 * 1024, 32 * 1024 * 1024),
                   100 * 1024 * 1024))


VMEM_LIMIT_BYTES = _default_vmem_limit()


# --------------------------- tile pickers ---------------------------------------

def _pick_nk_tile(dim, cap=768):
    """Largest lane-aligned divisor of dim <= cap; prefer multiples of 256 (MXU fill)."""
    if dim <= cap:
        return dim
    b256 = 0
    t = 256
    while t <= cap:
        if dim % t == 0:
            b256 = t
        t += 256
    b128 = 0
    t = 128
    while t <= cap:
        if dim % t == 0:
            b128 = t
        t += 128
    if b256 and 2 * b256 >= b128:
        return b256                      # e.g. I=12800 -> 512
    return b128 if b128 else dim         # e.g. C=3200 / 3C=9600 -> 640


def _pick_m_tile(m, cap=2048):
    """Cover all of M when it fits (weights streamed exactly once)."""
    if m <= cap:
        return m
    for t in range(cap - (cap % 128), 0, -128):
        if m % t == 0:
            return t
    for t in range(cap - (cap % 8), 0, -8):
        if m % t == 0:
            return t
    return m


def _pick_rows_tile(m, cap=512):
    if m <= cap:
        return m
    for t in range(cap - (cap % 8), 0, -8):
        if m % t == 0:
            return t
    return m


def _pick_kv_tile(s, cap=512):
    if s <= cap:
        return s
    for t in range(cap - (cap % 128), 0, -128):
        if s % t == 0:
            return t
    return s  # fallback: full-S KV block (e.g. S=1025)


# --------------------------- RMSNorm kernel -------------------------------------

def _rmsnorm_kernel(eps):
    def kernel(x_ref, w_ref, o_ref):
        x = x_ref[...].astype(jnp.float32)                    # (tm, C)
        var = jnp.mean(x * x, axis=-1, keepdims=True)
        y = x * jax.lax.rsqrt(var + eps) * w_ref[...]
        o_ref[...] = y.astype(o_ref.dtype)
    return kernel


def rms_norm(x, w, *, eps, out_dtype=jnp.bfloat16):
    """x: (M, C) f32;  w: (C,) f32.  Returns (M, C) in out_dtype."""
    M, C = x.shape
    tm = _pick_rows_tile(M)
    return pl.pallas_call(
        _rmsnorm_kernel(eps),
        out_shape=jax.ShapeDtypeStruct((M, C), out_dtype),
        grid=(M // tm,),
        in_specs=[
            pl.BlockSpec((tm, C), lambda i: (i, 0)),
            pl.BlockSpec((1, C), lambda i: (0, 0)),
        ],
        out_specs=pl.BlockSpec((tm, C), lambda i: (i, 0)),
        compiler_params=pltpu.CompilerParams(
            dimension_semantics=("parallel",),
            vmem_limit_bytes=VMEM_LIMIT_BYTES),
    )(x, w.reshape(1, C))


# --------------------------- merged q/k RMSNorm kernel ---------------------------
# One pass over the q|k slab of the fused QKV output; the softmax scale is folded
# into the q output (so attention needs no extra multiply).

def _qk_norm_kernel(eps, scale):
    def kernel(x_ref, qw_ref, kw_ref, q_ref, k_ref):
        C = qw_ref.shape[-1]
        x = x_ref[...].astype(jnp.float32)                    # (tm, 2C)
        q = x[:, :C]
        k = x[:, C:]
        qv = jnp.mean(q * q, axis=-1, keepdims=True)
        kv = jnp.mean(k * k, axis=-1, keepdims=True)
        qn = q * jax.lax.rsqrt(qv + eps) * qw_ref[...]
        if scale != 1.0:
            qn = qn * scale
        kn = k * jax.lax.rsqrt(kv + eps) * kw_ref[...]
        q_ref[...] = qn.astype(q_ref.dtype)
        k_ref[...] = kn.astype(k_ref.dtype)
    return kernel


def qk_norm(qkv, qw, kw, *, eps, scale):
    """qkv: (M, 3C) bf16; returns (q, k) each (M, C) bf16 (scale folded into q)."""
    M = qkv.shape[0]
    C = qw.shape[0]
    tm = _pick_rows_tile(M)
    return pl.pallas_call(
        _qk_norm_kernel(eps, scale),
        out_shape=(jax.ShapeDtypeStruct((M, C), jnp.bfloat16),
                   jax.ShapeDtypeStruct((M, C), jnp.bfloat16)),
        grid=(M // tm,),
        in_specs=[
            pl.BlockSpec((tm, 2 * C), lambda i: (i, 0)),
            pl.BlockSpec((1, C), lambda i: (0, 0)),
            pl.BlockSpec((1, C), lambda i: (0, 0)),
        ],
        out_specs=[
            pl.BlockSpec((tm, C), lambda i: (i, 0)),
            pl.BlockSpec((tm, C), lambda i: (i, 0)),
        ],
        compiler_params=pltpu.CompilerParams(
            dimension_semantics=("parallel",),
            vmem_limit_bytes=VMEM_LIMIT_BYTES),
    )(qkv, qw.reshape(1, C), kw.reshape(1, C))


# --------------------------- tiled linear kernel ---------------------------------
# y = act(x @ W_t + b)            (W_t = W.T, pre-transposed once: (in, out))
# or  y = residual + (x @ W_t + b) * ls
# bf16 matmul inputs, f32 accumulation in VMEM scratch, reduction grid axis over K.
# Two input layouts:
#   * x (M, K)       -> grid (M/tm, N/tn, K/tk)
#   * x (H, M, D)    -> head-major attention output; K grid axis == head, tk = D.

def _linear_kernel(has_bias, has_residual, activation, head_major):
    def kernel(*refs):
        x_ref, w_ref = refs[0], refs[1]
        pos = 2
        b_ref = res_ref = ls_ref = None
        if has_bias:
            b_ref = refs[pos]; pos += 1
        if has_residual:
            res_ref = refs[pos]; ls_ref = refs[pos + 1]; pos += 2
        o_ref = refs[pos]
        acc_ref = refs[pos + 1]

        kk = pl.program_id(2)

        @pl.when(kk == 0)
        def _():
            acc_ref[...] = jnp.zeros_like(acc_ref)

        x = x_ref[0] if head_major else x_ref[...]
        acc_ref[...] += jnp.dot(x, w_ref[...], preferred_element_type=jnp.float32)

        @pl.when(kk == pl.num_programs(2) - 1)
        def _():
            y = acc_ref[...]
            if has_bias:
                y = y + b_ref[...]
            if activation == "gelu":
                # exact erf GELU (PyTorch ACT2FN['gelu'])
                y = 0.5 * y * (1.0 + jax.lax.erf(y * np.float32(0.7071067811865476)))
            if has_residual:
                y = res_ref[...] + y * ls_ref[...]
            o_ref[...] = y.astype(o_ref.dtype)

    return kernel


def tiled_linear(x, w_t, b=None, residual=None, ls=None, activation=None,
                 out_dtype=jnp.float32):
    """x: (M, K) bf16 or head-major (H, M, D) bf16;  w_t: (K, N) bf16;
    b/ls: (N,) f32;  residual: (M, N) f32."""
    head_major = (x.ndim == 3)
    if head_major:
        G, M, D = x.shape
        K = G * D
    else:
        M, K = x.shape
    assert w_t.shape[0] == K
    N = w_t.shape[1]

    tm = _pick_m_tile(M)
    tn = _pick_nk_tile(N)
    if head_major:
        tk = D
        grid = (M // tm, N // tn, G)
    else:
        tk = _pick_nk_tile(K)
        grid = (M // tm, N // tn, K // tk)

    has_bias = b is not None
    has_residual = residual is not None

    if head_major:
        in_specs = [
            pl.BlockSpec((1, tm, D), lambda i, j, k: (k, i, 0)),
            pl.BlockSpec((tk, tn), lambda i, j, k: (k, j)),
        ]
    else:
        in_specs = [
            pl.BlockSpec((tm, tk), lambda i, j, k: (i, k)),
            pl.BlockSpec((tk, tn), lambda i, j, k: (k, j)),
        ]
    args = [x, w_t]
    if has_bias:
        in_specs.append(pl.BlockSpec((1, tn), lambda i, j, k: (0, j)))
        args.append(b.reshape(1, N))
    if has_residual:
        in_specs.append(pl.BlockSpec((tm, tn), lambda i, j, k: (i, j)))
        in_specs.append(pl.BlockSpec((1, tn), lambda i, j, k: (0, j)))
        args.append(residual)
        args.append(ls.reshape(1, N))

    # Advisory cost hint (includes the j-fold re-reads of x; weights stream once
    # because tm covers M for typical M).
    bytes_accessed = (int(x.size) * x.dtype.itemsize * (N // tn)
                      + int(w_t.size) * w_t.dtype.itemsize * (M // tm)
                      + M * N * jnp.dtype(out_dtype).itemsize)
    if has_bias:
        bytes_accessed += N * 4
    if has_residual:
        bytes_accessed += M * N * 4 + N * 4
    cost = pl.CostEstimate(
        flops=2 * M * N * K,
        transcendentals=(M * N if activation == "gelu" else 0),
        bytes_accessed=int(bytes_accessed))

    return pl.pallas_call(
        _linear_kernel(has_bias, has_residual, activation, head_major),
        out_shape=jax.ShapeDtypeStruct((M, N), out_dtype),
        grid=grid,
        in_specs=in_specs,
        out_specs=pl.BlockSpec((tm, tn), lambda i, j, k: (i, j)),
        scratch_shapes=[pltpu.VMEM((tm, tn), jnp.float32)],
        compiler_params=pltpu.CompilerParams(
            dimension_semantics=("parallel", "parallel", "arbitrary"),
            vmem_limit_bytes=VMEM_LIMIT_BYTES),
        cost_estimate=cost,
    )(*args)


# --------------------------- flash attention kernel ------------------------------
# grid = (B, H, num_kv_blocks): exact softmax attention via online (flash-style)
# accumulation over KV tiles.  q/k are already RMS-normed (scale folded into q),
# bf16; v is sliced per-head straight out of the bf16 QKV buffer by the index_map.
# Output is written head-major (H, B, S, D) -> contiguous (S, D) slabs.

def _flash_attn_kernel():
    def kernel(q_ref, k_ref, v_ref, o_ref, m_sc, l_sc, acc_sc):
        kv = pl.program_id(2)

        @pl.when(kv == 0)
        def _():
            m_sc[...] = jnp.full_like(m_sc, -jnp.inf)
            l_sc[...] = jnp.zeros_like(l_sc)
            acc_sc[...] = jnp.zeros_like(acc_sc)

        q = q_ref[0]                                           # (S, D) bf16
        k = k_ref[0]                                           # (tkv, D) bf16
        v = v_ref[0]                                           # (tkv, D) bf16
        s = jax.lax.dot_general(q, k, (((1,), (1,)), ((), ())),
                                preferred_element_type=jnp.float32)   # (S, tkv)
        m_prev = m_sc[...]
        m_new = jnp.maximum(m_prev, jnp.max(s, axis=-1, keepdims=True))
        alpha = jnp.exp(m_prev - m_new)
        p = jnp.exp(s - m_new)
        l_sc[...] = alpha * l_sc[...] + jnp.sum(p, axis=-1, keepdims=True)
        acc_sc[...] = alpha * acc_sc[...] + jnp.dot(
            p.astype(jnp.bfloat16), v, preferred_element_type=jnp.float32)
        m_sc[...] = m_new

        @pl.when(kv == pl.num_programs(2) - 1)
        def _():
            o_ref[0, 0] = (acc_sc[...] * pl.reciprocal(l_sc[...], approx=True)
                           ).astype(o_ref.dtype)
    return kernel


def flash_attention(q, k, qkv, num_heads):
    """q, k: (B, S, C) bf16 (scale folded into q);  qkv: (B, S, 3C) bf16.
    Returns head-major context (H, B, S, D) bf16."""
    B, S, C = q.shape
    H = num_heads
    D = C // H
    tkv = _pick_kv_tile(S)
    nkv = S // tkv

    qk_spec = pl.BlockSpec((1, S, D), lambda b, h, kv: (b, 0, h))
    k_spec = pl.BlockSpec((1, tkv, D), lambda b, h, kv: (b, kv, h))
    v_spec = pl.BlockSpec((1, tkv, D), lambda b, h, kv, H=H: (b, kv, 2 * H + h))
    cost = pl.CostEstimate(
        flops=4 * B * H * S * S * D,
        transcendentals=B * H * S * S,
        bytes_accessed=4 * B * S * C * 2)

    return pl.pallas_call(
        _flash_attn_kernel(),
        out_shape=jax.ShapeDtypeStruct((H, B, S, D), jnp.bfloat16),
        grid=(B, H, nkv),
        in_specs=[qk_spec, k_spec, v_spec],
        out_specs=pl.BlockSpec((1, 1, S, D), lambda b, h, kv: (h, b, 0, 0)),
        scratch_shapes=[pltpu.VMEM((S, 1), jnp.float32),
                        pltpu.VMEM((S, 1), jnp.float32),
                        pltpu.VMEM((S, D), jnp.float32)],
        compiler_params=pltpu.CompilerParams(
            dimension_semantics=("parallel", "parallel", "arbitrary"),
            vmem_limit_bytes=VMEM_LIMIT_BYTES),
        cost_estimate=cost,
    )(q, k, qkv)


# --------------------------- encoder layer / encoder -----------------------------

def encoder_layer_pallas(x, p, *, num_heads, eps):
    B, S, C = x.shape
    H = num_heads
    D = C // H
    scale = D ** (-0.5)
    M = B * S
    x2 = x.reshape(M, C)                                        # f32 residual stream

    # ---- attention branch ----
    xn = rms_norm(x2, p["norm1_w"], eps=eps)                    # (M, C)  bf16
    qkv = tiled_linear(xn, p["w_qkv_t"], out_dtype=jnp.bfloat16)  # (M, 3C) bf16
    q, k = qk_norm(qkv, p["q_norm_w"], p["k_norm_w"], eps=eps, scale=scale)  # bf16
    ctx = flash_attention(q.reshape(B, S, C), k.reshape(B, S, C),
                          qkv.reshape(B, S, 3 * C), H)          # (H, B, S, D) bf16
    ctx_hm = ctx.reshape(H, M, D)                               # contiguous reshape
    h1 = tiled_linear(ctx_hm, p["w_proj_t"], b=p["b_proj"],
                      residual=x2, ls=p["ls1"], out_dtype=jnp.float32)   # (M, C) f32

    # ---- MLP branch ----
    hn = rms_norm(h1, p["norm2_w"], eps=eps)                    # (M, C)  bf16
    f = tiled_linear(hn, p["w_fc1_t"], b=p["b_fc1"], activation="gelu",
                     out_dtype=jnp.bfloat16)                    # (M, I)  bf16
    h2 = tiled_linear(f, p["w_fc2_t"], b=p["b_fc2"],
                      residual=h1, ls=p["ls2"], out_dtype=jnp.float32)   # (M, C) f32
    return h2.reshape(B, S, C)


def intern_vision_encoder_pallas(inputs_embeds, layer_params, *, num_heads, eps):
    """Stacks num_hidden_layers InternVisionEncoderLayer forward passes."""
    hidden_states = inputs_embeds
    for p in layer_params:
        hidden_states = encoder_layer_pallas(hidden_states, p,
                                             num_heads=num_heads, eps=eps)
    return hidden_states  # last_hidden_state


# --------------------------- pure-JAX reference ----------------------------------
# Mirrors the kernels' mixed precision: bf16 matmul inputs, f32 accumulation,
# f32 norms/softmax/residuals — matching the PyTorch module's math structure.

def _ref_layer(x, p, num_heads, eps):
    B, S, C = x.shape
    D = C // num_heads
    scale = D ** (-0.5)

    def rms(h, w, s=1.0):
        hf = h.astype(jnp.float32)
        var = jnp.mean(hf * hf, axis=-1, keepdims=True)
        y = hf * jax.lax.rsqrt(var + eps) * w
        return y * s if s != 1.0 else y

    def lin(a_bf16, w_t, b=None):
        y = jnp.dot(a_bf16, w_t, preferred_element_type=jnp.float32)
        if b is not None:
            y = y + b
        return y

    xn = rms(x, p["norm1_w"]).astype(jnp.bfloat16)
    qkv = lin(xn, p["w_qkv_t"]).astype(jnp.bfloat16)            # (B, S, 3C) bf16
    q = rms(qkv[..., :C], p["q_norm_w"], scale).astype(jnp.bfloat16)
    k = rms(qkv[..., C:2 * C], p["k_norm_w"]).astype(jnp.bfloat16)
    v = qkv[..., 2 * C:]
    qh = q.reshape(B, S, num_heads, D).transpose(0, 2, 1, 3)
    kh = k.reshape(B, S, num_heads, D).transpose(0, 2, 1, 3)
    vh = v.reshape(B, S, num_heads, D).transpose(0, 2, 1, 3)
    s = jnp.einsum("bhqd,bhkd->bhqk", qh, kh, preferred_element_type=jnp.float32)
    pattn = jax.nn.softmax(s, axis=-1)
    ctx = jnp.einsum("bhqk,bhkd->bhqd", pattn.astype(jnp.bfloat16), vh,
                     preferred_element_type=jnp.float32)
    ctx = ctx.transpose(0, 2, 1, 3).reshape(B, S, C).astype(jnp.bfloat16)
    proj = lin(ctx, p["w_proj_t"], p["b_proj"])
    h1 = x + proj * p["ls1"]
    hn = rms(h1, p["norm2_w"]).astype(jnp.bfloat16)
    f = jax.nn.gelu(lin(hn, p["w_fc1_t"], p["b_fc1"]), approximate=False)
    f = f.astype(jnp.bfloat16)
    f2 = lin(f, p["w_fc2_t"], p["b_fc2"])
    return h1 + f2 * p["ls2"]


def _ref_encoder(x, layer_params, num_heads, eps):
    for p in layer_params:
        x = _ref_layer(x, p, num_heads, eps)
    return x


# --------------------------------- main -------------------------------------------

if __name__ == "__main__":
    # Small, lane-dense config consistent with the module (C, I, head_dim multiples
    # of 128; S multiple of 8) — same layout class as the real InternViT-6B shapes
    # (C=3200, I=12800, D=128).
    B, S = 2, 128               # batch, sequence length
    C = 256                     # hidden_size
    H = 2                       # num_attention_heads (head_dim = 128)
    I = 512                     # intermediate_size
    L = 2                       # num_hidden_layers
    EPS = 1e-6                  # layer_norm_eps
    INIT_FACTOR = 0.1           # initializer_factor for ls1/ls2

    key = jax.random.PRNGKey(0)
    key, xk = jax.random.split(key)
    x = jax.random.normal(xk, (B, S, C), dtype=jnp.float32)

    def init_layer(k):
        ks = jax.random.split(k, 7)
        std = 0.02
        # Linear weights are stored pre-transposed (in, out) == PyTorch W.T, done
        # once at load time, and streamed to the MXU in bf16.
        return {
            "norm1_w": jnp.ones((C,), jnp.float32),
            "w_qkv_t": (std * jax.random.normal(ks[0], (C, 3 * C))).astype(jnp.bfloat16),
            "q_norm_w": jnp.ones((C,), jnp.float32),
            "k_norm_w": jnp.ones((C,), jnp.float32),
            "w_proj_t": (std * jax.random.normal(ks[1], (C, C))).astype(jnp.bfloat16),
            "b_proj": std * jax.random.normal(ks[2], (C,), jnp.float32),
            "ls1": INIT_FACTOR * jnp.ones((C,), jnp.float32),
            "norm2_w": jnp.ones((C,), jnp.float32),
            "w_fc1_t": (std * jax.random.normal(ks[3], (C, I))).astype(jnp.bfloat16),
            "b_fc1": std * jax.random.normal(ks[4], (I,), jnp.float32),
            "w_fc2_t": (std * jax.random.normal(ks[5], (I, C))).astype(jnp.bfloat16),
            "b_fc2": std * jax.random.normal(ks[6], (C,), jnp.float32),
            "ls2": INIT_FACTOR * jnp.ones((C,), jnp.float32),
        }

    layer_keys = jax.random.split(key, L)
    layer_params = [init_layer(layer_keys[i]) for i in range(L)]

    out = intern_vision_encoder_pallas(x, layer_params, num_heads=H, eps=EPS)
    out = jax.block_until_ready(out)

    ref = jax.block_until_ready(_ref_encoder(x, layer_params, H, EPS))
    np.testing.assert_allclose(np.asarray(out), np.asarray(ref), rtol=2e-2, atol=2e-2)

    print("KERNEL_OK")
</pallas_src>

<mosaic_0001>
module attributes {stable_mosaic.version = 11 : i64} {
  func.func @kernel(%arg0: i32, %arg1: memref<256x256xf32, #tpu.memory_space<vmem>>, %arg2: memref<1x256xf32, #tpu.memory_space<vmem>>, %arg3: memref<256x256xbf16, #tpu.memory_space<vmem>>) attributes {dimension_semantics = [#tpu.dimension_semantics<parallel>], iteration_bounds = array<i64: 1>, scalar_prefetch = 0 : i64, scratch_operands = 0 : i64, tpu.core_type = #tpu.core_type<tc>, window_params = [{transform_indices = @transform_0, window_bounds = array<i64: 256, 256>}, {pipeline_mode = #tpu.pipeline_mode<synchronous>, transform_indices = @transform_1, window_bounds = array<i64: 1, 256>}, {transform_indices = @transform_2, window_bounds = array<i64: 256, 256>}]} {
    %c0 = arith.constant 0 : index
    %c0_0 = arith.constant 0 : index
    %0 = vector.load %arg1[%c0, %c0_0] : memref<256x256xf32, #tpu.memory_space<vmem>>, vector<256x256xf32>
    %1 = arith.mulf %0, %0 : vector<256x256xf32>
    %cst = arith.constant dense<0.000000e+00> : vector<256xf32>
    %2 = vector.multi_reduction <add>, %1, %cst [1] : vector<256x256xf32> to vector<256xf32>
    %3 = vector.shape_cast %2 : vector<256xf32> to vector<256x1xf32>
    %cst_1 = arith.constant 2.560000e+02 : f32
    %4 = vector.broadcast %cst_1 : f32 to vector<256x1xf32>
    %5 = arith.divf %3, %4 : vector<256x1xf32>
    %cst_2 = arith.constant 9.99999997E-7 : f32
    %6 = vector.broadcast %cst_2 : f32 to vector<256x1xf32>
    %7 = arith.addf %5, %6 : vector<256x1xf32>
    %8 = math.rsqrt %7 : vector<256x1xf32>
    %9 = vector.broadcast %8 : vector<256x1xf32> to vector<256x256xf32>
    %10 = arith.mulf %0, %9 : vector<256x256xf32>
    %c0_3 = arith.constant 0 : index
    %c0_4 = arith.constant 0 : index
    %11 = vector.load %arg2[%c0_3, %c0_4] : memref<1x256xf32, #tpu.memory_space<vmem>>, vector<1x256xf32>
    %12 = vector.broadcast %11 : vector<1x256xf32> to vector<256x256xf32>
    %13 = arith.mulf %10, %12 : vector<256x256xf32>
    %14 = arith.truncf %13 : vector<256x256xf32> to vector<256x256xbf16>
    %c0_5 = arith.constant 0 : index
    %c0_6 = arith.constant 0 : index
    %15 = vector.load %arg3[%c0_5, %c0_6] : memref<256x256xbf16, #tpu.memory_space<vmem>>, vector<256x256xbf16>
    tpu.vector_store %arg3[%c0_5, %c0_6], %14 {strides = array<i32>} : memref<256x256xbf16, #tpu.memory_space<vmem>>, vector<256x256xbf16>,
    return
  }
  func.func @transform_0(%arg0: i32) -> (i32, i32) {
    %c0_i32 = arith.constant 0 : i32
    %c0_i32_0 = arith.constant 0 : i32
    return %arg0, %c0_i32 : i32, i32
  }
  func.func @transform_1(%arg0: i32) -> (i32, i32) {
    %c0_i32 = arith.constant 0 : i32
    %c0_i32_0 = arith.constant 0 : i32
    %c0_i32_1 = arith.constant 0 : i32
    return %c0_i32, %c0_i32_0 : i32, i32
  }
  func.func @transform_2(%arg0: i32) -> (i32, i32) {
    %c0_i32 = arith.constant 0 : i32
    %c0_i32_0 = arith.constant 0 : i32
    return %arg0, %c0_i32 : i32, i32
  }
}

</mosaic_0001>

<llo_original>
// kernel: tpu_custom_call.1
$region0: #{tpu_custom_call.1}
  #allocation0 [shape = 'u32[]', space=smem, size = 0x4, offset = 0x4, fixed_abs, tag = 'smem constant byte address 0x4 - core index']
  #allocation1 [shape = 'u32[144,128]{1,0:T(1,128)}', space=vmem, size = 0x12000, scoped, tag = 'internal scratch']
  %s0 = inlined_call_operand.hbm [shape: f32[256,256], index: 0, kind: input, shape index: {}]
  %s1 = inlined_call_operand.hbm [shape: f32[1,256], index: 1, kind: input, shape index: {}]
  %s2 = inlined_call_operand.hbm [shape: bf16[256,256], index: 2, kind: output, shape index: {}]
  %s3 = sld [smem:[#allocation0]]
  $region26: #{tpu_custom_call.1} parent=0
    _
  %s5 = ssub.s32 1, %s3
  %s6 = scalar_select 0, %s5, %s3
  $region1: #{tpu_custom_call.1} parent=0
    #allocation2 [shape = 'u8[262144]{0}', space=vmem, size = 0x40000, scoped, tag = 'input window, operand 0, single buffered']
    #allocation3 [shape = 's32[1]{0}', space=sflag, size = 0x4, scoped, tag = 'scoped memory for tpu_custom_call.1']
    #allocation4 [shape = 's32[1]{0}', space=sflag, size = 0x4, scoped, tag = 'scoped memory for tpu_custom_call.1']
    #allocation5 [shape = 'u8[1024]{0}', space=vmem, size = 0x400, scoped, tag = 'input window, operand 1, single buffered']
    #allocation6 [shape = 's32[1]{0}', space=sflag, size = 0x4, scoped, tag = 'scoped memory for tpu_custom_call.1']
    #allocation7 [shape = 'u8[131072]{0}', space=vmem, size = 0x20000, scoped, tag = 'output window, operand 0, single buffered']
    %7 = vsyncpa [#allocation3], 0
    %8 = vsyncpa [#allocation6], 0
    %9 = vsyncpa [#allocation4], 0
    // Predicated region
    $region2: #{tpu_custom_call.1} parent=1 // pred_check
      _
    $region3: #{tpu_custom_call.1} parent=1 // pred_check_branch
      %11 = sbr.rel (0) target = $region5
    $region4: #{tpu_custom_call.1} parent=1 // pred_region
      %s13 = ssub.s32 8192, 8192
      %14 = vsyncadd [#allocation3], %s13
      %s15 = sshll.u32 [#allocation2], 4
      %s16 = int_to_ptr.vmem [resolvable:$true] %s15
      %21 = dma.hbm_to_vmem [thread:$0]  %s0, 8192, %s16, [#allocation3], 256, 256, 16
    $region5: #{tpu_custom_call.1} parent=1 // pred_fallthru
      _
    // Predicated region
    $region6: #{tpu_custom_call.1} parent=1 // pred_check
      _
    $region7: #{tpu_custom_call.1} parent=1 // pred_check_branch
      %23 = sbr.rel (0) target = $region9
    $region8: #{tpu_custom_call.1} parent=1 // pred_region
      %s25 = ssub.s32 32, 32
      %26 = vsyncadd [#allocation6], %s25
      %s28 = sshll.u32 [#allocation5], 4
      %s29 = int_to_ptr.vmem [resolvable:$true] %s28
      %31 = dma.hbm_to_vmem [thread:$0]  %s1, 32, %s29, [#allocation6]
    $region9: #{tpu_custom_call.1} parent=1 // pred_fallthru
      _
    // Predicated region
    $region10: #{tpu_custom_call.1} parent=1 // pred_check
      _
    $region11: #{tpu_custom_call.1} parent=1 // pred_check_branch
      %33 = sbr.rel (0) target = $region13
    $region12: #{tpu_custom_call.1} parent=1 // pred_region
      %34 = dma.done [#allocation3], 8192
    $region13: #{tpu_custom_call.1} parent=1 // pred_fallthru
      _
    // Predicated region
    $region14: #{tpu_custom_call.1} parent=1 // pred_check
      _
    $region15: #{tpu_custom_call.1} parent=1 // pred_check_branch
      %36 = sbr.rel (0) target = $region17
    $region16: #{tpu_custom_call.1} parent=1 // pred_region
      %37 = dma.done [#allocation6], 32
    $region17: #{tpu_custom_call.1} parent=1 // pred_fallthru
      _
    %v38 = vld [vmem:[#allocation2] sm:$0xff]
    %v39 = vld [vmem:[#allocation2 + $0x8] sm:$0xff]
    %v40 = vld [vmem:[#allocation2 + $0x10] sm:$0xff]
    %v41 = vld [vmem:[#allocation2 + $0x18] sm:$0xff]
    %v42 = vld [vmem:[#allocation2 + $0x20] sm:$0xff]
    %v43 = vld [vmem:[#allocation2 + $0x28] sm:$0xff]
    %v44 = vld [vmem:[#allocation2 + $0x30] sm:$0xff]
    %v45 = vld [vmem:[#allocation2 + $0x38] sm:$0xff]
    %v46 = vld [vmem:[#allocation2 + $0x40] sm:$0xff]
    %v47 = vld [vmem:[#allocation2 + $0x48] sm:$0xff]
    %v48 = vld [vmem:[#allocation2 + $0x50] sm:$0xff]
    %v49 = vld [vmem:[#allocation2 + $0x58] sm:$0xff]
    %v50 = vld [vmem:[#allocation2 + $0x60] sm:$0xff]
    %v51 = vld [vmem:[#allocation2 + $0x68] sm:$0xff]
    %v52 = vld [vmem:[#allocation2 + $0x70] sm:$0xff]
    %v53 = vld [vmem:[#allocation2 + $0x78] sm:$0xff]
    %v54 = vld [vmem:[#allocation2 + $0x80] sm:$0xff]
    %v55 = vld [vmem:[#allocation2 + $0x88] sm:$0xff]
    %v56 = vld [vmem:[#allocation2 + $0x90] sm:$0xff]
    %v57 = vld [vmem:[#allocation2 + $0x98] sm:$0xff]
    %v58 = vld [vmem:[#allocation2 + $0xa0] sm:$0xff]
    %v59 = vld [vmem:[#allocation2 + $0xa8] sm:$0xff]
    %v60 = vld [vmem:[#allocation2 + $0xb0] sm:$0xff]
    %v61 = vld [vmem:[#allocation2 + $0xb8] sm:$0xff]
    %v62 = vld [vmem:[#allocation2 + $0xc0] sm:$0xff]
    %v63 = vld [vmem:[#allocation2 + $0xc8] sm:$0xff]
    %v64 = vld [vmem:[#allocation2 + $0xd0] sm:$0xff]
    %v65 = vld [vmem:[#allocation2 + $0xd8] sm:$0xff]
    %v66 = vld [vmem:[#allocation2 + $0xe0] sm:$0xff]
    %v67 = vld [vmem:[#allocation2 + $0xe8] sm:$0xff]
    %v68 = vld [vmem:[#allocation2 + $0xf0] sm:$0xff]
    %v69 = vld [vmem:[#allocation2 + $0xf8] sm:$0xff]
    %v70 = vld [vmem:[#allocation2 + $0x100] sm:$0xff]
    %v71 = vld [vmem:[#allocation2 + $0x108] sm:$0xff]
    %v72 = vld [vmem:[#allocation2 + $0x110] sm:$0xff]
    %v73 = vld [vmem:[#allocation2 + $0x118] sm:$0xff]
    %v74 = vld [vmem:[#allocation2 + $0x120] sm:$0xff]
    %v75 = vld [vmem:[#allocation2 + $0x128] sm:$0xff]
    %v76 = vld [vmem:[#allocation2 + $0x130] sm:$0xff]
    %v77 = vld [vmem:[#allocation2 + $0x138] sm:$0xff]
    %v78 = vld [vmem:[#allocation2 + $0x140] sm:$0xff]
    %v79 = vld [vmem:[#allocation2 + $0x148] sm:$0xff]
    %v80 = vld [vmem:[#allocation2 + $0x150] sm:$0xff]
    %v81 = vld [vmem:[#allocation2 + $0x158] sm:$0xff]
    %v82 = vld [vmem:[#allocation2 + $0x160] sm:$0xff]
    %v83 = vld [vmem:[#allocation2 + $0x168] sm:$0xff]
    %v84 = vld [vmem:[#allocation2 + $0x170] sm:$0xff]
    %v85 = vld [vmem:[#allocation2 + $0x178] sm:$0xff]
    %v86 = vld [vmem:[#allocation2 + $0x180] sm:$0xff]
    %v87 = vld [vmem:[#allocation2 + $0x188] sm:$0xff]
    %v88 = vld [vmem:[#allocation2 + $0x190] sm:$0xff]
    %v89 = vld [vmem:[#allocation2 + $0x198] sm:$0xff]
    %v90 = vld [vmem:[#allocation2 + $0x1a0] sm:$0xff]
    %v91 = vld [vmem:[#allocation2 + $0x1a8] sm:$0xff]
    %v92 = vld [vmem:[#allocation2 + $0x1b0] sm:$0xff]
    %v93 = vld [vmem:[#allocation2 + $0x1b8] sm:$0xff]
    %v94 = vld [vmem:[#allocation2 + $0x1c0] sm:$0xff]
    %v95 = vld [vmem:[#allocation2 + $0x1c8] sm:$0xff]
    %v96 = vld [vmem:[#allocation2 + $0x1d0] sm:$0xff]
    %v97 = vld [vmem:[#allocation2 + $0x1d8] sm:$0xff]
    %v98 = vld [vmem:[#allocation2 + $0x1e0] sm:$0xff]
    %v99 = vld [vmem:[#allocation2 + $0x1e8] sm:$0xff]
    %v100 = vld [vmem:[#allocation2 + $0x1f0] sm:$0xff]
    %v101 = vld [vmem:[#allocation2 + $0x1f8] sm:$0xff]
    %v102 = vmul.f32 %v38, %v38
    %v103 = vmul.f32 %v39, %v39
    %v104 = vmul.f32 %v40, %v40
    %v105 = vmul.f32 %v41, %v41
    %v106 = vmul.f32 %v42, %v42
    %v107 = vmul.f32 %v43, %v43
    %v108 = vmul.f32 %v44, %v44
    %v109 = vmul.f32 %v45, %v45
    %v110 = vmul.f32 %v46, %v46
    %v111 = vmul.f32 %v47, %v47
    %v112 = vmul.f32 %v48, %v48
    %v113 = vmul.f32 %v49, %v49
    %v114 = vmul.f32 %v50, %v50
    %v115 = vmul.f32 %v51, %v51
    %v116 = vmul.f32 %v52, %v52
    %v117 = vmul.f32 %v53, %v53
    %v118 = vmul.f32 %v54, %v54
    %v119 = vmul.f32 %v55, %v55
    %v120 = vmul.f32 %v56, %v56
    %v121 = vmul.f32 %v57, %v57
    %v122 = vmul.f32 %v58, %v58
    %v123 = vmul.f32 %v59, %v59
    %v124 = vmul.f32 %v60, %v60
    %v125 = vmul.f32 %v61, %v61
    %v126 = vmul.f32 %v62, %v62
    %v127 = vmul.f32 %v63, %v63
    %v128 = vmul.f32 %v64, %v64
    %v129 = vmul.f32 %v65, %v65
    %v130 = vmul.f32 %v66, %v66
    %v131 = vmul.f32 %v67, %v67
    %v132 = vmul.f32 %v68, %v68
    %v133 = vmul.f32 %v69, %v69
    %v134 = vmul.f32 %v70, %v70
    %v135 = vmul.f32 %v71, %v71
    %v136 = vmul.f32 %v72, %v72
    %v137 = vmul.f32 %v73, %v73
    %v138 = vmul.f32 %v74, %v74
    %v139 = vmul.f32 %v75, %v75
    %v140 = vmul.f32 %v76, %v76
    %v141 = vmul.f32 %v77, %v77
    %v142 = vmul.f32 %v78, %v78
    %v143 = vmul.f32 %v79, %v79
    %v144 = vmul.f32 %v80, %v80
    %v145 = vmul.f32 %v81, %v81
    %v146 = vmul.f32 %v82, %v82
    %v147 = vmul.f32 %v83, %v83
    %v148 = vmul.f32 %v84, %v84
    %v149 = vmul.f32 %v85, %v85
    %v150 = vmul.f32 %v86, %v86
    %v151 = vmul.f32 %v87, %v87
    %v152 = vmul.f32 %v88, %v88
    %v153 = vmul.f32 %v89, %v89
    %v154 = vmul.f32 %v90, %v90
    %v155 = vmul.f32 %v91, %v91
    %v156 = vmul.f32 %v92, %v92
    %v157 = vmul.f32 %v93, %v93
    %v158 = vmul.f32 %v94, %v94
    %v159 = vmul.f32 %v95, %v95
    %v160 = vmul.f32 %v96, %v96
    %v161 = vmul.f32 %v97, %v97
    %v162 = vmul.f32 %v98, %v98
    %v163 = vmul.f32 %v99, %v99
    %v164 = vmul.f32 %v100, %v100
    %v165 = vmul.f32 %v101, %v101
    %v166 = vadd.f32 %v102, %v103
    %167 = vadd.xlane.f32.xlu0 %v166
    %v168 = vpop.xlane.xlu0 %167
    %v169 = vadd.f32 %v104, %v105
    %170 = vadd.xlane.f32.xlu0 %v169
    %v171 = vpop.xlane.xlu0 %170
    %v172 = vadd.f32 %v106, %v107
    %173 = vadd.xlane.f32.xlu0 %v172
    %v174 = vpop.xlane.xlu0 %173
    %v175 = vadd.f32 %v108, %v109
    %176 = vadd.xlane.f32.xlu0 %v175
    %v177 = vpop.xlane.xlu0 %176
    %v178 = vadd.f32 %v110, %v111
    %179 = vadd.xlane.f32.xlu0 %v178
    %v180 = vpop.xlane.xlu0 %179
    %v181 = vadd.f32 %v112, %v113
    %182 = vadd.xlane.f32.xlu0 %v181
    %v183 = vpop.xlane.xlu0 %182
    %v184 = vadd.f32 %v114, %v115
    %185 = vadd.xlane.f32.xlu0 %v184
    %v186 = vpop.xlane.xlu0 %185
    %v187 = vadd.f32 %v116, %v117
    %188 = vadd.xlane.f32.xlu0 %v187
    %v189 = vpop.xlane.xlu0 %188
    %v190 = vadd.f32 %v118, %v119
    %191 = vadd.xlane.f32.xlu0 %v190
    %v192 = vpop.xlane.xlu0 %191
    %v193 = vadd.f32 %v120, %v121
    %194 = vadd.xlane.f32.xlu0 %v193
    %v195 = vpop.xlane.xlu0 %194
    %v196 = vadd.f32 %v122, %v123
    %197 = vadd.xlane.f32.xlu0 %v196
    %v198 = vpop.xlane.xlu0 %197
    %v199 = vadd.f32 %v124, %v125
    %200 = vadd.xlane.f32.xlu0 %v199
    %v201 = vpop.xlane.xlu0 %200
    %v202 = vadd.f32 %v126, %v127
    %203 = vadd.xlane.f32.xlu0 %v202
    %v204 = vpop.xlane.xlu0 %203
    %v205 = vadd.f32 %v128, %v129
    %206 = vadd.xlane.f32.xlu0 %v205
    %v207 = vpop.xlane.xlu0 %206
    %v208 = vadd.f32 %v130, %v131
    %209 = vadd.xlane.f32.xlu0 %v208
    %v210 = vpop.xlane.xlu0 %209
    %v211 = vadd.f32 %v132, %v133
    %212 = vadd.xlane.f32.xlu0 %v211
    %v213 = vpop.xlane.xlu0 %212
    %v214 = vadd.f32 %v134, %v135
    %215 = vadd.xlane.f32.xlu0 %v214
    %v216 = vpop.xlane.xlu0 %215
    %v217 = vadd.f32 %v136, %v137
    %218 = vadd.xlane.f32.xlu0 %v217
    %v219 = vpop.xlane.xlu0 %218
    %v220 = vadd.f32 %v138, %v139
    %221 = vadd.xlane.f32.xlu0 %v220
    %v222 = vpop.xlane.xlu0 %221
    %v223 = vadd.f32 %v140, %v141
    %224 = vadd.xlane.f32.xlu0 %v223
    %v225 = vpop.xlane.xlu0 %224
    %v226 = vadd.f32 %v142, %v143
    %227 = vadd.xlane.f32.xlu0 %v226
    %v228 = vpop.xlane.xlu0 %227
    %v229 = vadd.f32 %v144, %v145
    %230 = vadd.xlane.f32.xlu0 %v229
    %v231 = vpop.xlane.xlu0 %230
    %v232 = vadd.f32 %v146, %v147
    %233 = vadd.xlane.f32.xlu0 %v232
    %v234 = vpop.xlane.xlu0 %233
    %v235 = vadd.f32 %v148, %v149
    %236 = vadd.xlane.f32.xlu0 %v235
    %v237 = vpop.xlane.xlu0 %236
    %v238 = vadd.f32 %v150, %v151
    %239 = vadd.xlane.f32.xlu0 %v238
    %v240 = vpop.xlane.xlu0 %239
    %v241 = vadd.f32 %v152, %v153
    %242 = vadd.xlane.f32.xlu0 %v241
    %v243 = vpop.xlane.xlu0 %242
    %v244 = vadd.f32 %v154, %v155
    %245 = vadd.xlane.f32.xlu0 %v244
    %v246 = vpop.xlane.xlu0 %245
    %v247 = vadd.f32 %v156, %v157
    %248 = vadd.xlane.f32.xlu0 %v247
    %v249 = vpop.xlane.xlu0 %248
    %v250 = vadd.f32 %v158, %v159
    %251 = vadd.xlane.f32.xlu0 %v250
    %v252 = vpop.xlane.xlu0 %251
    %v253 = vadd.f32 %v160, %v161
    %254 = vadd.xlane.f32.xlu0 %v253
    %v255 = vpop.xlane.xlu0 %254
    %v256 = vadd.f32 %v162, %v163
    %257 = vadd.xlane.f32.xlu0 %v256
    %v258 = vpop.xlane.xlu0 %257
    %v259 = vadd.f32 %v164, %v165
    %260 = vadd.xlane.f32.xlu0 %v259
    %v261 = vpop.xlane.xlu0 %260
    %v262 = vrcp.pop 256.0
    %v263 = vmul.f32 %v168, %v262
    %v264 = vmul.f32 %v171, %v262
    %v265 = vmul.f32 %v174, %v262
    %v266 = vmul.f32 %v177, %v262
    %v267 = vmul.f32 %v180, %v262
    %v268 = vmul.f32 %v183, %v262
    %v269 = vmul.f32 %v186, %v262
    %v270 = vmul.f32 %v189, %v262
    %v271 = vmul.f32 %v192, %v262
    %v272 = vmul.f32 %v195, %v262
    %v273 = vmul.f32 %v198, %v262
    %v274 = vmul.f32 %v201, %v262
    %v275 = vmul.f32 %v204, %v262
    %v276 = vmul.f32 %v207, %v262
    %v277 = vmul.f32 %v210, %v262
    %v278 = vmul.f32 %v213, %v262
    %v279 = vmul.f32 %v216, %v262
    %v280 = vmul.f32 %v219, %v262
    %v281 = vmul.f32 %v222, %v262
    %v282 = vmul.f32 %v225, %v262
    %v283 = vmul.f32 %v228, %v262
    %v284 = vmul.f32 %v231, %v262
    %v285 = vmul.f32 %v234, %v262
    %v286 = vmul.f32 %v237, %v262
    %v287 = vmul.f32 %v240, %v262
    %v288 = vmul.f32 %v243, %v262
    %v289 = vmul.f32 %v246, %v262
    %v290 = vmul.f32 %v249, %v262
    %v291 = vmul.f32 %v252, %v262
    %v292 = vmul.f32 %v255, %v262
    %v293 = vmul.f32 %v258, %v262
    %v294 = vmul.f32 %v261, %v262
    %v295 = vadd.f32 %v263, 1e-06
    %v296 = vadd.f32 %v264, 1e-06
    %v297 = vadd.f32 %v265, 1e-06
    %v298 = vadd.f32 %v266, 1e-06
    %v299 = vadd.f32 %v267, 1e-06
    %v300 = vadd.f32 %v268, 1e-06
    %v301 = vadd.f32 %v269, 1e-06
    %v302 = vadd.f32 %v270, 1e-06
    %v303 = vadd.f32 %v271, 1e-06
    %v304 = vadd.f32 %v272, 1e-06
    %v305 = vadd.f32 %v273, 1e-06
    %v306 = vadd.f32 %v274, 1e-06
    %v307 = vadd.f32 %v275, 1e-06
    %v308 = vadd.f32 %v276, 1e-06
    %v309 = vadd.f32 %v277, 1e-06
    %v310 = vadd.f32 %v278, 1e-06
    %v311 = vadd.f32 %v279, 1e-06
    %v312 = vadd.f32 %v280, 1e-06
    %v313 = vadd.f32 %v281, 1e-06
    %v314 = vadd.f32 %v282, 1e-06
    %v315 = vadd.f32 %v283, 1e-06
    %v316 = vadd.f32 %v284, 1e-06
    %v317 = vadd.f32 %v285, 1e-06
    %v318 = vadd.f32 %v286, 1e-06
    %v319 = vadd.f32 %v287, 1e-06
    %v320 = vadd.f32 %v288, 1e-06
    %v321 = vadd.f32 %v289, 1e-06
    %v322 = vadd.f32 %v290, 1e-06
    %v323 = vadd.f32 %v291, 1e-06
    %v324 = vadd.f32 %v292, 1e-06
    %v325 = vadd.f32 %v293, 1e-06
    %v326 = vadd.f32 %v294, 1e-06
    %v327 = vrsqrt.pop %v295
    %v328 = vrsqrt.pop %v296
    %v329 = vrsqrt.pop %v297
    %v330 = vrsqrt.pop %v298
    %v331 = vrsqrt.pop %v299
    %v332 = vrsqrt.pop %v300
    %v333 = vrsqrt.pop %v301
    %v334 = vrsqrt.pop %v302
    %v335 = vrsqrt.pop %v303
    %v336 = vrsqrt.pop %v304
    %v337 = vrsqrt.pop %v305
    %v338 = vrsqrt.pop %v306
    %v339 = vrsqrt.pop %v307
    %v340 = vrsqrt.pop %v308
    %v341 = vrsqrt.pop %v309
    %v342 = vrsqrt.pop %v310
    %v343 = vrsqrt.pop %v311
    %v344 = vrsqrt.pop %v312
    %v345 = vrsqrt.pop %v313
    %v346 = vrsqrt.pop %v314
    %v347 = vrsqrt.pop %v315
    %v348 = vrsqrt.pop %v316
    %v349 = vrsqrt.pop %v317
    %v350 = vrsqrt.pop %v318
    %v351 = vrsqrt.pop %v319
    %v352 = vrsqrt.pop %v320
    %v353 = vrsqrt.pop %v321
    %v354 = vrsqrt.pop %v322
    %v355 = vrsqrt.pop %v323
    %v356 = vrsqrt.pop %v324
    %v357 = vrsqrt.pop %v325
    %v358 = vrsqrt.pop %v326
    %v359 = vmul.f32 %v38, %v327
    %v360 = vmul.f32 %v39, %v327
    %v361 = vmul.f32 %v40, %v328
    %v362 = vmul.f32 %v41, %v328
    %v363 = vmul.f32 %v42, %v329
    %v364 = vmul.f32 %v43, %v329
    %v365 = vmul.f32 %v44, %v330
    %v366 = vmul.f32 %v45, %v330
    %v367 = vmul.f32 %v46, %v331
    %v368 = vmul.f32 %v47, %v331
    %v369 = vmul.f32 %v48, %v332
    %v370 = vmul.f32 %v49, %v332
    %v371 = vmul.f32 %v50, %v333
    %v372 = vmul.f32 %v51, %v333
    %v373 = vmul.f32 %v52, %v334
    %v374 = vmul.f32 %v53, %v334
    %v375 = vmul.f32 %v54, %v335
    %v376 = vmul.f32 %v55, %v335
    %v377 = vmul.f32 %v56, %v336
    %v378 = vmul.f32 %v57, %v336
    %v379 = vmul.f32 %v58, %v337
    %v380 = vmul.f32 %v59, %v337
    %v381 = vmul.f32 %v60, %v338
    %v382 = vmul.f32 %v61, %v338
    %v383 = vmul.f32 %v62, %v339
    %v384 = vmul.f32 %v63, %v339
    %v385 = vmul.f32 %v64, %v340
    %v386 = vmul.f32 %v65, %v340
    %v387 = vmul.f32 %v66, %v341
    %v388 = vmul.f32 %v67, %v341
    %v389 = vmul.f32 %v68, %v342
    %v390 = vmul.f32 %v69, %v342
    %v391 = vmul.f32 %v70, %v343
    %v392 = vmul.f32 %v71, %v343
    %v393 = vmul.f32 %v72, %v344
    %v394 = vmul.f32 %v73, %v344
    %v395 = vmul.f32 %v74, %v345
    %v396 = vmul.f32 %v75, %v345
    %v397 = vmul.f32 %v76, %v346
    %v398 = vmul.f32 %v77, %v346
    %v399 = vmul.f32 %v78, %v347
    %v400 = vmul.f32 %v79, %v347
    %v401 = vmul.f32 %v80, %v348
    %v402 = vmul.f32 %v81, %v348
    %v403 = vmul.f32 %v82, %v349
    %v404 = vmul.f32 %v83, %v349
    %v405 = vmul.f32 %v84, %v350
    %v406 = vmul.f32 %v85, %v350
    %v407 = vmul.f32 %v86, %v351
    %v408 = vmul.f32 %v87, %v351
    %v409 = vmul.f32 %v88, %v352
    %v410 = vmul.f32 %v89, %v352
    %v411 = vmul.f32 %v90, %v353
    %v412 = vmul.f32 %v91, %v353
    %v413 = vmul.f32 %v92, %v354
    %v414 = vmul.f32 %v93, %v354
    %v415 = vmul.f32 %v94, %v355
    %v416 = vmul.f32 %v95, %v355
    %v417 = vmul.f32 %v96, %v356
    %v418 = vmul.f32 %v97, %v356
    %v419 = vmul.f32 %v98, %v357
    %v420 = vmul.f32 %v99, %v357
    %v421 = vmul.f32 %v100, %v358
    %v422 = vmul.f32 %v101, %v358
    %v423 = vld [vmem:[#allocation5] sm:$0x3]
    %v425 = vlaneseq
    %v426 = vshrl.u32 %v425, 7
    %v427 = vsub.s32 0, %v426
    %v428 = vrot.slane %v423, %v427
    %v429 = vlaneseq
    %v430 = vshrl.u32 %v429, 7
    %v431 = vsub.s32 1, %v430
    %v432 = vrot.slane %v423, %v431
    %v435 = vmul.f32 %v359, %v428
    %v436 = vmul.f32 %v360, %v432
    %v437 = vmul.f32 %v361, %v428
    %v438 = vmul.f32 %v362, %v432
    %v439 = vmul.f32 %v363, %v428
    %v440 = vmul.f32 %v364, %v432
    %v441 = vmul.f32 %v365, %v428
    %v442 = vmul.f32 %v366, %v432
    %v443 = vmul.f32 %v367, %v428
    %v444 = vmul.f32 %v368, %v432
    %v445 = vmul.f32 %v369, %v428
    %v446 = vmul.f32 %v370, %v432
    %v447 = vmul.f32 %v371, %v428
    %v448 = vmul.f32 %v372, %v432
    %v449 = vmul.f32 %v373, %v428
    %v450 = vmul.f32 %v374, %v432
    %v451 = vmul.f32 %v375, %v428
    %v452 = vmul.f32 %v376, %v432
    %v453 = vmul.f32 %v377, %v428
    %v454 = vmul.f32 %v378, %v432
    %v455 = vmul.f32 %v379, %v428
    %v456 = vmul.f32 %v380, %v432
    %v457 = vmul.f32 %v381, %v428
    %v458 = vmul.f32 %v382, %v432
    %v459 = vmul.f32 %v383, %v428
    %v460 = vmul.f32 %v384, %v432
    %v461 = vmul.f32 %v385, %v428
    %v462 = vmul.f32 %v386, %v432
    %v463 = vmul.f32 %v387, %v428
    %v464 = vmul.f32 %v388, %v432
    %v465 = vmul.f32 %v389, %v428
    %v466 = vmul.f32 %v390, %v432
    %v467 = vmul.f32 %v391, %v428
    %v468 = vmul.f32 %v392, %v432
    %v469 = vmul.f32 %v393, %v428
    %v470 = vmul.f32 %v394, %v432
    %v471 = vmul.f32 %v395, %v428
    %v472 = vmul.f32 %v396, %v432
    %v473 = vmul.f32 %v397, %v428
    %v474 = vmul.f32 %v398, %v432
    %v475 = vmul.f32 %v399, %v428
    %v476 = vmul.f32 %v400, %v432
    %v477 = vmul.f32 %v401, %v428
    %v478 = vmul.f32 %v402, %v432
    %v479 = vmul.f32 %v403, %v428
    %v480 = vmul.f32 %v404, %v432
    %v481 = vmul.f32 %v405, %v428
    %v482 = vmul.f32 %v406, %v432
    %v483 = vmul.f32 %v407, %v428
    %v484 = vmul.f32 %v408, %v432
    %v485 = vmul.f32 %v409, %v428
    %v486 = vmul.f32 %v410, %v432
    %v487 = vmul.f32 %v411, %v428
    %v488 = vmul.f32 %v412, %v432
    %v489 = vmul.f32 %v413, %v428
    %v490 = vmul.f32 %v414, %v432
    %v491 = vmul.f32 %v415, %v428
    %v492 = vmul.f32 %v416, %v432
    %v493 = vmul.f32 %v417, %v428
    %v494 = vmul.f32 %v418, %v432
    %v495 = vmul.f32 %v419, %v428
    %v496 = vmul.f32 %v420, %v432
    %v497 = vmul.f32 %v421, %v428
    %v498 = vmul.f32 %v422, %v432
    %v499 = vpack.c.bf16 %v437, %v435
    %v500 = vpack.c.bf16 %v438, %v436
    %v501 = vpack.c.bf16 %v441, %v439
    %v502 = vpack.c.bf16 %v442, %v440
    %v503 = vpack.c.bf16 %v445, %v443
    %v504 = vpack.c.bf16 %v446, %v444
    %v505 = vpack.c.bf16 %v449, %v447
    %v506 = vpack.c.bf16 %v450, %v448
    %v507 = vpack.c.bf16 %v453, %v451
    %v508 = vpack.c.bf16 %v454, %v452
    %v509 = vpack.c.bf16 %v457, %v455
    %v510 = vpack.c.bf16 %v458, %v456
    %v511 = vpack.c.bf16 %v461, %v459
    %v512 = vpack.c.bf16 %v462, %v460
    %v513 = vpack.c.bf16 %v465, %v463
    %v514 = vpack.c.bf16 %v466, %v464
    %v515 = vpack.c.bf16 %v469, %v467
    %v516 = vpack.c.bf16 %v470, %v468
    %v517 = vpack.c.bf16 %v473, %v471
    %v518 = vpack.c.bf16 %v474, %v472
    %v519 = vpack.c.bf16 %v477, %v475
    %v520 = vpack.c.bf16 %v478, %v476
    %v521 = vpack.c.bf16 %v481, %v479
    %v522 = vpack.c.bf16 %v482, %v480
    %v523 = vpack.c.bf16 %v485, %v483
    %v524 = vpack.c.bf16 %v486, %v484
    %v525 = vpack.c.bf16 %v489, %v487
    %v526 = vpack.c.bf16 %v490, %v488
    %v527 = vpack.c.bf16 %v493, %v491
    %v528 = vpack.c.bf16 %v494, %v492
    %v529 = vpack.c.bf16 %v497, %v495
    %v530 = vpack.c.bf16 %v498, %v496
    %v563 = vunpack.c.l.b16 %v499
    %v564 = vunpack.c.l.b16 %v500
    %v565 = vunpack.c.h.b16 %v499
    %v566 = vunpack.c.h.b16 %v500
    %v567 = vunpack.c.l.b16 %v501
    %v568 = vunpack.c.l.b16 %v502
    %v569 = vunpack.c.h.b16 %v501
    %v570 = vunpack.c.h.b16 %v502
    %v571 = vunpack.c.l.b16 %v503
    %v572 = vunpack.c.l.b16 %v504
    %v573 = vunpack.c.h.b16 %v503
    %v574 = vunpack.c.h.b16 %v504
    %v575 = vunpack.c.l.b16 %v505
    %v576 = vunpack.c.l.b16 %v506
    %v577 = vunpack.c.h.b16 %v505
    %v578 = vunpack.c.h.b16 %v506
    %v579 = vunpack.c.l.b16 %v507
    %v580 = vunpack.c.l.b16 %v508
    %v581 = vunpack.c.h.b16 %v507
    %v582 = vunpack.c.h.b16 %v508
    %v583 = vunpack.c.l.b16 %v509
    %v584 = vunpack.c.l.b16 %v510
    %v585 = vunpack.c.h.b16 %v509
    %v586 = vunpack.c.h.b16 %v510
    %v587 = vunpack.c.l.b16 %v511
    %v588 = vunpack.c.l.b16 %v512
    %v589 = vunpack.c.h.b16 %v511
    %v590 = vunpack.c.h.b16 %v512
    %v591 = vunpack.c.l.b16 %v513
    %v592 = vunpack.c.l.b16 %v514
    %v593 = vunpack.c.h.b16 %v513
    %v594 = vunpack.c.h.b16 %v514
    %v595 = vunpack.c.l.b16 %v515
    %v596 = vunpack.c.l.b16 %v516
    %v597 = vunpack.c.h.b16 %v515
    %v598 = vunpack.c.h.b16 %v516
    %v599 = vunpack.c.l.b16 %v517
    %v600 = vunpack.c.l.b16 %v518
    %v601 = vunpack.c.h.b16 %v517
    %v602 = vunpack.c.h.b16 %v518
    %v603 = vunpack.c.l.b16 %v519
    %v604 = vunpack.c.l.b16 %v520
    %v605 = vunpack.c.h.b16 %v519
    %v606 = vunpack.c.h.b16 %v520
    %v607 = vunpack.c.l.b16 %v521
    %v608 = vunpack.c.l.b16 %v522
    %v609 = vunpack.c.h.b16 %v521
    %v610 = vunpack.c.h.b16 %v522
    %v611 = vunpack.c.l.b16 %v523
    %v612 = vunpack.c.l.b16 %v524
    %v613 = vunpack.c.h.b16 %v523
    %v614 = vunpack.c.h.b16 %v524
    %v615 = vunpack.c.l.b16 %v525
    %v616 = vunpack.c.l.b16 %v526
    %v617 = vunpack.c.h.b16 %v525
    %v618 = vunpack.c.h.b16 %v526
    %v619 = vunpack.c.l.b16 %v527
    %v620 = vunpack.c.l.b16 %v528
    %v621 = vunpack.c.h.b16 %v527
    %v622 = vunpack.c.h.b16 %v528
    %v623 = vunpack.c.l.b16 %v529
    %v624 = vunpack.c.l.b16 %v530
    %v625 = vunpack.c.h.b16 %v529
    %v626 = vunpack.c.h.b16 %v530
    %v627 = vpack.c.b16 %v564, %v563
    %v628 = vpack.c.b16 %v566, %v565
    %v629 = vpack.c.b16 %v568, %v567
    %v630 = vpack.c.b16 %v570, %v569
    %v631 = vpack.c.b16 %v572, %v571
    %v632 = vpack.c.b16 %v574, %v573
    %v633 = vpack.c.b16 %v576, %v575
    %v634 = vpack.c.b16 %v578, %v577
    %v635 = vpack.c.b16 %v580, %v579
    %v636 = vpack.c.b16 %v582, %v581
    %v637 = vpack.c.b16 %v584, %v583
    %v638 = vpack.c.b16 %v586, %v585
    %v639 = vpack.c.b16 %v588, %v587
    %v640 = vpack.c.b16 %v590, %v589
    %v641 = vpack.c.b16 %v592, %v591
    %v642 = vpack.c.b16 %v594, %v593
    %v643 = vpack.c.b16 %v596, %v595
    %v644 = vpack.c.b16 %v598, %v597
    %v645 = vpack.c.b16 %v600, %v599
    %v646 = vpack.c.b16 %v602, %v601
    %v647 = vpack.c.b16 %v604, %v603
    %v648 = vpack.c.b16 %v606, %v605
    %v649 = vpack.c.b16 %v608, %v607
    %v650 = vpack.c.b16 %v610, %v609
    %v651 = vpack.c.b16 %v612, %v611
    %v652 = vpack.c.b16 %v614, %v613
    %v653 = vpack.c.b16 %v616, %v615
    %v654 = vpack.c.b16 %v618, %v617
    %v655 = vpack.c.b16 %v620, %v619
    %v656 = vpack.c.b16 %v622, %v621
    %v657 = vpack.c.b16 %v624, %v623
    %v658 = vpack.c.b16 %v626, %v625
    %691 = vst [vmem:[#allocation7] sm:$0xff] %v627
    %692 = vst [vmem:[#allocation7 + $0x8] sm:$0xff] %v628
    %693 = vst [vmem:[#allocation7 + $0x10] sm:$0xff] %v629
    %694 = vst [vmem:[#allocation7 + $0x18] sm:$0xff] %v630
    %695 = vst [vmem:[#allocation7 + $0x20] sm:$0xff] %v631
    %696 = vst [vmem:[#allocation7 + $0x28] sm:$0xff] %v632
    %697 = vst [vmem:[#allocation7 + $0x30] sm:$0xff] %v633
    %698 = vst [vmem:[#allocation7 + $0x38] sm:$0xff] %v634
    %699 = vst [vmem:[#allocation7 + $0x40] sm:$0xff] %v635
    %700 = vst [vmem:[#allocation7 + $0x48] sm:$0xff] %v636
    %701 = vst [vmem:[#allocation7 + $0x50] sm:$0xff] %v637
    %702 = vst [vmem:[#allocation7 + $0x58] sm:$0xff] %v638
    %703 = vst [vmem:[#allocation7 + $0x60] sm:$0xff] %v639
    %704 = vst [vmem:[#allocation7 + $0x68] sm:$0xff] %v640
    %705 = vst [vmem:[#allocation7 + $0x70] sm:$0xff] %v641
    %706 = vst [vmem:[#allocation7 + $0x78] sm:$0xff] %v642
    %707 = vst [vmem:[#allocation7 + $0x80] sm:$0xff] %v643
    %708 = vst [vmem:[#allocation7 + $0x88] sm:$0xff] %v644
    %709 = vst [vmem:[#allocation7 + $0x90] sm:$0xff] %v645
    %710 = vst [vmem:[#allocation7 + $0x98] sm:$0xff] %v646
    %711 = vst [vmem:[#allocation7 + $0xa0] sm:$0xff] %v647
    %712 = vst [vmem:[#allocation7 + $0xa8] sm:$0xff] %v648
    %713 = vst [vmem:[#allocation7 + $0xb0] sm:$0xff] %v649
    %714 = vst [vmem:[#allocation7 + $0xb8] sm:$0xff] %v650
    %715 = vst [vmem:[#allocation7 + $0xc0] sm:$0xff] %v651
    %716 = vst [vmem:[#allocation7 + $0xc8] sm:$0xff] %v652
    %717 = vst [vmem:[#allocation7 + $0xd0] sm:$0xff] %v653
    %718 = vst [vmem:[#allocation7 + $0xd8] sm:$0xff] %v654
    %719 = vst [vmem:[#allocation7 + $0xe0] sm:$0xff] %v655
    %720 = vst [vmem:[#allocation7 + $0xe8] sm:$0xff] %v656
    %721 = vst [vmem:[#allocation7 + $0xf0] sm:$0xff] %v657
    %722 = vst [vmem:[#allocation7 + $0xf8] sm:$0xff] %v658
    // Predicated region
    $region18: #{tpu_custom_call.1} parent=1 // pred_check
      _
    $region19: #{tpu_custom_call.1} parent=1 // pred_check_branch
      %724 = sbr.rel (0) target = $region21
    $region20: #{tpu_custom_call.1} parent=1 // pred_region
      %s726 = ssub.s32 4096, 4096
      %727 = vsyncadd [#allocation4], %s726
      %s728 = sshll.u32 [#allocation7], 4
      %s729 = int_to_ptr.vmem [resolvable:$true] %s728
      %734 = dma.vmem_to_hbm [thread:$0]  %s729, 4096, %s2, [#allocation4], 128, 128, 8
    $region21: #{tpu_custom_call.1} parent=1 // pred_fallthru
      _
    // Predicated region
    $region22: #{tpu_custom_call.1} parent=1 // pred_check
      _
    $region23: #{tpu_custom_call.1} parent=1 // pred_check_branch
      %736 = sbr.rel (0) target = $region25
    $region24: #{tpu_custom_call.1} parent=1 // pred_region
      %737 = dma.done [#allocation4], 4096
    $region25: #{tpu_custom_call.1} parent=1 // pred_fallthru
      _
    %738 = vsyncpa [#allocation3], 1
    %739 = vsyncpa [#allocation6], 1
    %740 = vsyncpa [#allocation4], 1

</llo_original>
